<compile_context>
chip_gen: v5e
topology: v5e:2x2
jax: 0.10.0
libtpu: 0.0.40
codegen_flags: <defaults>
</compile_context>

<pallas_src>
import functools

import jax
import jax.numpy as jnp
from jax.experimental import pallas as pl
from jax.experimental.pallas import tpu as pltpu


def _label_smooth_ce_kernel(
    logits_ref, targets_ref, loss_ref, acc_ref, *,
    num_classes, epsilon, n_total, tile_n, tiles_per_core,
):
    core = pl.program_id(0)       # "parallel" axis (megacore split)
    step = pl.program_id(1)       # "arbitrary" axis (accumulator carry)

    @pl.when(step == 0)
    def _init():
        acc_ref[...] = jnp.zeros_like(acc_ref)

    x = logits_ref[...].astype(jnp.float32)                 # (tile_n, C) f32
    t = targets_ref[...]                                    # (tile_n, 1) int32

    # Numerically stable log-softmax pieces; xm is shared by both reductions.
    m = jnp.max(x, axis=1, keepdims=True)                   # (tile_n, 1)
    xm = x - m
    lse = jnp.log(jnp.sum(jnp.exp(xm), axis=1, keepdims=True))

    # Fused target + smoothing reduce:
    #   w_c = eps/C everywhere, plus (1-eps) at the target column; Σ_c w_c = 1
    #   row_loss = -(Σ_c w_c * logp_c) = lse - Σ_c w_c * (x_c - m)
    col = jax.lax.broadcasted_iota(jnp.int32, x.shape, 1)
    w_hit = jnp.float32(1.0 - epsilon + epsilon / num_classes)
    w_miss = jnp.float32(epsilon / num_classes)
    wxm = jnp.sum(jnp.where(col == t, w_hit, w_miss) * xm, axis=1, keepdims=True)
    row_loss = lse - wxm                                     # (tile_n, 1)

    # Mask rows past the true batch (ragged last tile / clamped duplicate tile).
    tile_idx = core * tiles_per_core + step
    row = jax.lax.broadcasted_iota(jnp.int32, row_loss.shape, 0) + tile_idx * tile_n
    row_loss = jnp.where(row < n_total, row_loss, 0.0)

    # Cheap per-step VPU accumulate; no per-step XLU reduce / SMEM RMW.
    acc_ref[...] += row_loss

    @pl.when(step == pl.num_programs(1) - 1)
    def _finalize():
        loss_ref[0, 0] = jnp.sum(acc_ref[...])


def _pick_tile_n(n, c, in_bytes):
    """~2 MiB of input-dtype bytes per logits block, dtype-aware sublane rounding."""
    c_lanes = ((c + 127) // 128) * 128
    sub = 8 * max(1, 4 // in_bytes)            # f32 -> 8, bf16 -> 16, int8 -> 32
    target_bytes = 2 * 1024 * 1024
    tile = target_bytes // (c_lanes * in_bytes)
    tile = max(sub, min(tile, 2048))
    tile = (tile // sub) * sub
    if tile >= n:
        return n                               # single full-height block (always legal)
    return tile


def _vmem_limit_bytes(tile_n, c, in_bytes):
    """Budget: double-buffered input blocks + in-kernel f32 temporaries + scratch."""
    c_lanes = ((c + 127) // 128) * 128
    rows = ((tile_n + 7) // 8) * 8
    block_in = rows * c_lanes * in_bytes       # logits block (input dtype)
    block_tgt = rows * 128 * 4                 # (tile_n, 1) int32 lane-pads to 128
    temps_f32 = 4 * rows * c_lanes * 4         # x(f32), xm, exp(xm), weighted tile
    acc = rows * 128 * 4                       # VMEM accumulator scratch
    need = 2 * block_in + 2 * block_tgt + temps_f32 + acc
    limit = int(need * 1.5)                    # headroom for compiler temporaries
    return max(32 * 1024 * 1024, min(limit, 64 * 1024 * 1024))


def cross_entropy_label_smooth(inputs, targets, *, num_classes, epsilon, tile_n=None):
    """inputs: (N, num_classes) float logits; targets: (N,) int class indices."""
    n, c = inputs.shape
    assert c == num_classes
    in_bytes = inputs.dtype.itemsize

    if tile_n is None:
        tile_n = _pick_tile_n(n, c, in_bytes)
    tile_n = int(tile_n)

    targets_2d = targets.astype(jnp.int32).reshape(n, 1)

    total_tiles = -(-n // tile_n)
    # Two-way "parallel" split across TensorCores (used on v7x megacore; runs
    # serially with negligible overhead on single-TC chips).
    num_splits = 2 if total_tiles >= 2 else 1
    tiles_per_core = -(-total_tiles // num_splits)

    kernel = functools.partial(
        _label_smooth_ce_kernel,
        num_classes=num_classes,
        epsilon=epsilon,
        n_total=n,
        tile_n=tile_n,
        tiles_per_core=tiles_per_core,
    )

    def tile_map(c_idx, s_idx):
        # Clamp so a fully-out-of-range duplicate tile still DMAs valid memory;
        # its rows are masked to zero inside the kernel.
        idx = jnp.minimum(c_idx * tiles_per_core + s_idx, total_tiles - 1)
        return (idx, 0)

    grid_spec = pltpu.PrefetchScalarGridSpec(
        num_scalar_prefetch=0,
        grid=(num_splits, tiles_per_core),
        in_specs=[
            pl.BlockSpec((tile_n, c), tile_map),      # logits tile (VMEM)
            pl.BlockSpec((tile_n, 1), tile_map),      # targets tile (VMEM)
        ],
        out_specs=pl.BlockSpec(
            (1, 1), lambda c_idx, s_idx: (c_idx, 0),
            memory_space=pltpu.MemorySpace.SMEM,      # per-core partial sum
        ),
        scratch_shapes=[pltpu.VMEM((tile_n, 1), jnp.float32)],  # per-core accumulator
    )

    partials = pl.pallas_call(
        kernel,
        out_shape=jax.ShapeDtypeStruct((num_splits, 1), jnp.float32),
        grid_spec=grid_spec,
        compiler_params=pltpu.CompilerParams(
            dimension_semantics=("parallel", "arbitrary"),
            vmem_limit_bytes=_vmem_limit_bytes(tile_n, c, in_bytes),
        ),
    )(inputs, targets_2d)

    return jnp.sum(partials) / jnp.float32(n)


def _reference(inputs, targets, num_classes, epsilon):
    log_probs = jax.nn.log_softmax(inputs.astype(jnp.float32), axis=1)
    one_hot = jax.nn.one_hot(targets, num_classes, dtype=jnp.float32)
    smooth = (1.0 - epsilon) * one_hot + epsilon / num_classes
    return (-smooth * log_probs).mean(0).sum()


if __name__ == "__main__":
    epsilon = 0.1
    key = jax.random.PRNGKey(0)

    # Case 1: small f32, single tile, single core-split.
    k1, k2, k3, k4, k5, k6 = jax.random.split(key, 6)
    n1, c1 = 8, 128
    logits1 = jax.random.normal(k1, (n1, c1), dtype=jnp.float32)
    targets1 = jax.random.randint(k2, (n1,), 0, c1, dtype=jnp.int32)
    loss1 = jax.block_until_ready(
        cross_entropy_label_smooth(logits1, targets1, num_classes=c1, epsilon=epsilon)
    )
    ref1 = _reference(logits1, targets1, c1, epsilon)
    assert jnp.allclose(loss1, ref1, rtol=1e-5, atol=1e-5), (loss1, ref1)

    # Case 2: f32, forced small tile -> multi-tile, ragged last tile, 2-way core split.
    n2, c2 = 100, 16
    logits2 = jax.random.normal(k3, (n2, c2), dtype=jnp.float32)
    targets2 = jax.random.randint(k4, (n2,), 0, c2, dtype=jnp.int32)
    loss2 = jax.block_until_ready(
        cross_entropy_label_smooth(
            logits2, targets2, num_classes=c2, epsilon=epsilon, tile_n=16
        )
    )
    ref2 = _reference(logits2, targets2, c2, epsilon)
    assert jnp.allclose(loss2, ref2, rtol=1e-5, atol=1e-5), (loss2, ref2)

    # Case 3: bf16 logits (dtype-aware tiling path; kernel casts to f32 internally).
    n3, c3 = 8, 128
    logits3 = jax.random.normal(k5, (n3, c3), dtype=jnp.float32).astype(jnp.bfloat16)
    targets3 = jax.random.randint(k6, (n3,), 0, c3, dtype=jnp.int32)
    loss3 = jax.block_until_ready(
        cross_entropy_label_smooth(logits3, targets3, num_classes=c3, epsilon=epsilon)
    )
    ref3 = _reference(logits3, targets3, c3, epsilon)
    assert jnp.allclose(loss3, ref3, rtol=1e-4, atol=1e-4), (loss3, ref3)

    print("KERNEL_OK")
</pallas_src>

<mosaic_0001>
module attributes {stable_mosaic.version = 11 : i64} {
  func.func @_label_smooth_ce_kernel(%arg0: i32, %arg1: i32, %arg2: memref<8x128xf32, #tpu.memory_space<vmem>>, %arg3: memref<8x1xi32, #tpu.memory_space<vmem>>, %arg4: memref<1x1xf32, #tpu.memory_space<smem>>, %arg5: memref<8x1xf32, #tpu.memory_space<vmem>>) attributes {dimension_semantics = [#tpu.dimension_semantics<parallel>, #tpu.dimension_semantics<arbitrary>], iteration_bounds = array<i64: 1, 1>, scalar_prefetch = 0 : i64, scratch_operands = 1 : i64, tpu.core_type = #tpu.core_type<tc>, window_params = [{transform_indices = @transform_0, window_bounds = array<i64: 8, 128>}, {transform_indices = @transform_1, window_bounds = array<i64: 8, 1>}, {transform_indices = @transform_2, window_bounds = array<i64: 1, 1>}]} {
    %c0_i32 = arith.constant 0 : i32
    %0 = arith.cmpi eq, %arg1, %c0_i32 : i32
    %1 = arith.extui %0 : i1 to i32
    %c0_i32_0 = arith.constant 0 : i32
    %2 = arith.cmpi ne, %1, %c0_i32_0 : i32
    scf.if %2 {
      %cst_16 = arith.constant 0.000000e+00 : f32
      %39 = vector.broadcast %cst_16 : f32 to vector<8x1xf32>
      %c0_17 = arith.constant 0 : index
      %c0_18 = arith.constant 0 : index
      %40 = vector.load %arg5[%c0_17, %c0_18] : memref<8x1xf32, #tpu.memory_space<vmem>>, vector<8x1xf32>
      tpu.vector_store %arg5[%c0_17, %c0_18], %39 {strides = array<i32>} : memref<8x1xf32, #tpu.memory_space<vmem>>, vector<8x1xf32>,
    } else {
    }
    %c0 = arith.constant 0 : index
    %c0_1 = arith.constant 0 : index
    %3 = vector.load %arg2[%c0, %c0_1] : memref<8x128xf32, #tpu.memory_space<vmem>>, vector<8x128xf32>
    %c0_2 = arith.constant 0 : index
    %c0_3 = arith.constant 0 : index
    %4 = vector.load %arg3[%c0_2, %c0_3] : memref<8x1xi32, #tpu.memory_space<vmem>>, vector<8x1xi32>
    %cst = arith.constant dense<0xFF800000> : vector<8xf32>
    %5 = vector.multi_reduction <maximumf>, %3, %cst [1] : vector<8x128xf32> to vector<8xf32>
    %6 = vector.shape_cast %5 : vector<8xf32> to vector<8x1xf32>
    %7 = vector.broadcast %6 : vector<8x1xf32> to vector<8x128xf32>
    %8 = arith.subf %3, %7 : vector<8x128xf32>
    %9 = math.exp %8 : vector<8x128xf32>
    %cst_4 = arith.constant dense<0.000000e+00> : vector<8xf32>
    %10 = vector.multi_reduction <add>, %9, %cst_4 [1] : vector<8x128xf32> to vector<8xf32>
    %11 = vector.shape_cast %10 : vector<8xf32> to vector<8x1xf32>
    %12 = math.log %11 : vector<8x1xf32>
    %13 = tpu.iota {dimensions = array<i32: 1>} : vector<8x128xi32>
    %14 = vector.broadcast %4 : vector<8x1xi32> to vector<8x128xi32>
    %15 = arith.cmpi eq, %13, %14 : vector<8x128xi32>
    %cst_5 = arith.constant 0.900781273 : f32
    %cst_6 = arith.constant 7.812500e-04 : f32
    %16 = vector.broadcast %cst_5 : f32 to vector<8x128xf32>
    %17 = vector.broadcast %cst_6 : f32 to vector<8x128xf32>
    %18 = arith.select %15, %16, %17 : vector<8x128xi1>, vector<8x128xf32>
    %19 = arith.mulf %18, %8 : vector<8x128xf32>
    %cst_7 = arith.constant dense<0.000000e+00> : vector<8xf32>
    %20 = vector.multi_reduction <add>, %19, %cst_7 [1] : vector<8x128xf32> to vector<8xf32>
    %21 = vector.shape_cast %20 : vector<8xf32> to vector<8x1xf32>
    %22 = arith.subf %12, %21 : vector<8x1xf32>
    %c1_i32 = arith.constant 1 : i32
    %23 = arith.muli %arg0, %c1_i32 : i32
    %24 = arith.addi %23, %arg1 : i32
    %25 = tpu.iota {dimensions = array<i32: 0>} : vector<8x1xi32>
    %c8_i32 = arith.constant 8 : i32
    %26 = arith.muli %24, %c8_i32 : i32
    %27 = vector.broadcast %26 : i32 to vector<8x1xi32>
    %28 = arith.addi %25, %27 : vector<8x1xi32>
    %c8_i32_8 = arith.constant 8 : i32
    %29 = vector.broadcast %c8_i32_8 : i32 to vector<8x1xi32>
    %30 = arith.cmpi slt, %28, %29 : vector<8x1xi32>
    %cst_9 = arith.constant 0.000000e+00 : f32
    %31 = vector.broadcast %cst_9 : f32 to vector<8x1xf32>
    %32 = arith.select %30, %22, %31 : vector<8x1xi1>, vector<8x1xf32>
    %c0_10 = arith.constant 0 : index
    %c0_11 = arith.constant 0 : index
    %33 = vector.load %arg5[%c0_10, %c0_11] : memref<8x1xf32, #tpu.memory_space<vmem>>, vector<8x1xf32>
    %34 = arith.addf %33, %32 : vector<8x1xf32>
    %c0_12 = arith.constant 0 : index
    %c0_13 = arith.constant 0 : index
    %35 = vector.load %arg5[%c0_12, %c0_13] : memref<8x1xf32, #tpu.memory_space<vmem>>, vector<8x1xf32>
    tpu.vector_store %arg5[%c0_12, %c0_13], %34 {strides = array<i32>} : memref<8x1xf32, #tpu.memory_space<vmem>>, vector<8x1xf32>,
    %c0_i32_14 = arith.constant 0 : i32
    %36 = arith.cmpi eq, %arg1, %c0_i32_14 : i32
    %37 = arith.extui %36 : i1 to i32
    %c0_i32_15 = arith.constant 0 : i32
    %38 = arith.cmpi ne, %37, %c0_i32_15 : i32
    scf.if %38 {
      %c0_16 = arith.constant 0 : index
      %c0_17 = arith.constant 0 : index
      %39 = vector.load %arg5[%c0_16, %c0_17] : memref<8x1xf32, #tpu.memory_space<vmem>>, vector<8x1xf32>
      %40 = vector.shape_cast %39 : vector<8x1xf32> to vector<1x8x1xf32>
      %cst_18 = arith.constant dense<0.000000e+00> : vector<1xf32>
      %41 = vector.multi_reduction <add>, %40, %cst_18 [1, 2] : vector<1x8x1xf32> to vector<1xf32>
      %42 = vector.shape_cast %41 : vector<1xf32> to vector<1x1x1xf32>
      %43 = vector.extract %42[0, 0, 0] : f32 from vector<1x1x1xf32>
      %c0_19 = arith.constant 0 : index
      %c0_20 = arith.constant 0 : index
      %44 = memref.load %arg4[%c0_19, %c0_20] : memref<1x1xf32, #tpu.memory_space<smem>>
      memref.store %43, %arg4[%c0_19, %c0_20] : memref<1x1xf32, #tpu.memory_space<smem>>
    } else {
    }
    return
  }
  func.func @transform_0(%arg0: i32, %arg1: i32) -> (i32, i32) {
    %c1_i32 = arith.constant 1 : i32
    %0 = arith.muli %arg0, %c1_i32 : i32
    %1 = arith.addi %0, %arg1 : i32
    %c0_i32 = arith.constant 0 : i32
    %2 = arith.minsi %1, %c0_i32 : i32
    %c0_i32_0 = arith.constant 0 : i32
    %c0_i32_1 = arith.constant 0 : i32
    return %2, %c0_i32_0 : i32, i32
  }
  func.func @transform_1(%arg0: i32, %arg1: i32) -> (i32, i32) {
    %c1_i32 = arith.constant 1 : i32
    %0 = arith.muli %arg0, %c1_i32 : i32
    %1 = arith.addi %0, %arg1 : i32
    %c0_i32 = arith.constant 0 : i32
    %2 = arith.minsi %1, %c0_i32 : i32
    %c0_i32_0 = arith.constant 0 : i32
    %c0_i32_1 = arith.constant 0 : i32
    return %2, %c0_i32_0 : i32, i32
  }
  func.func @transform_2(%arg0: i32, %arg1: i32) -> (i32, i32) {
    %c0_i32 = arith.constant 0 : i32
    %c0_i32_0 = arith.constant 0 : i32
    return %arg0, %c0_i32 : i32, i32
  }
}

</mosaic_0001>

<llo_original>
// kernel: tpu_custom_call.1
$region0: #{tpu_custom_call.1}
  #allocation0 [shape = 'u32[]', space=smem, size = 0x4, offset = 0x4, fixed_abs, tag = 'smem constant byte address 0x4 - core index']
  #allocation1 [shape = 'u32[72,128]{1,0:T(1,128)}', space=vmem, size = 0x9000, scoped, tag = 'internal scratch']
  #allocation2 [shape = 'f32[8,1]{1,0:T(8,128)}', space=vmem, size = 0x1000, scoped, tag = 'scratch operand']
  %s0 = inlined_call_operand.vmem [shape: f32[8,128], index: 0, kind: input, shape index: {}]
  %s1 = inlined_call_operand.vmem [shape: s32[8,1], index: 1, kind: input, shape index: {}]
  %s2 = inlined_call_operand.hbm [shape: f32[1,1], index: 2, kind: output, shape index: {}]
  %s3 = sld [smem:[#allocation0]]
  $region26: #{tpu_custom_call.1} parent=0
    _
  %s5 = ssub.s32 1, %s3
  %s6 = scalar_select 0, %s5, %s3
  $region1: #{tpu_custom_call.1} parent=0
    #allocation3 [shape = 'u8[512]{0}', space=smem, size = 0x200, scoped, tag = 'output window, operand 0, single buffered']
    #allocation4 [shape = 's32[1]{0}', space=sflag, size = 0x4, scoped, tag = 'scoped memory for tpu_custom_call.1']
    %7 = vsyncpa [#allocation4], 0
    // Predicated region
    $region2: #{tpu_custom_call.1} parent=1 // pred_check
      _
    $region3: #{tpu_custom_call.1} parent=1 // pred_check_branch
      %9 = sbr.rel (0) target = $region5
    $region4: #{tpu_custom_call.1} parent=1 // pred_region
      %s10 = sadd.s32 0, 0
      %p11 = scmp.lt.s32.totalorder %s10, 0
      %s12 = scalar_select %p11, %s10, 0
      %p13 = scmp.lt.s32.totalorder %s12, 0
      %s14 = scalar_select %p13, %s12, 0
      %s15 = smul.addr %s14, 8
      %s16 = scalar_lea.vmem %s0, %s15
      %s17 = sadd.s32 0, 0
      %p18 = scmp.lt.s32.totalorder %s17, 0
      %s19 = scalar_select %p18, %s17, 0
    $region5: #{tpu_custom_call.1} parent=1 // pred_fallthru
      _
    // Predicated region
    $region6: #{tpu_custom_call.1} parent=1 // pred_check
      _
    $region7: #{tpu_custom_call.1} parent=1 // pred_check_branch
      %21 = sbr.rel (0) target = $region9
    $region8: #{tpu_custom_call.1} parent=1 // pred_region
      %s22 = sadd.s32 0, 0
      %p23 = scmp.lt.s32.totalorder %s22, 0
      %s24 = scalar_select %p23, %s22, 0
      %p25 = scmp.lt.s32.totalorder %s24, 0
      %s26 = scalar_select %p25, %s24, 0
      %s27 = smul.addr %s26, 8
      %s28 = scalar_lea.vmem %s1, %s27
      %s29 = sadd.s32 0, 0
      %p30 = scmp.lt.s32.totalorder %s29, 0
      %s31 = scalar_select %p30, %s29, 0
    $region9: #{tpu_custom_call.1} parent=1 // pred_fallthru
      _
    %s32 = sadd.s32 0, 0
    %p33 = scmp.lt.s32.totalorder %s32, 0
    %s34 = scalar_select %p33, %s32, 0
    %p35 = scmp.lt.s32.totalorder %s34, 0
    %s36 = scalar_select %p35, %s34, 0
    %s37 = smul.addr %s36, 8
    %s38 = scalar_lea.vmem %s0, %s37
    %s39 = sadd.s32 0, 0
    %p40 = scmp.lt.s32.totalorder %s39, 0
    %s41 = scalar_select %p40, %s39, 0
    %p42 = scmp.lt.s32.totalorder %s41, 0
    %s43 = scalar_select %p42, %s41, 0
    %s44 = smul.addr %s43, 8
    %s45 = scalar_lea.vmem %s1, %s44
    %s46 = sadd.s32 0, 0
    %p47 = scmp.lt.s32.totalorder %s46, 0
    %s48 = scalar_select %p47, %s46, 0
    %p49 = scmp.lt.s32.totalorder %s48, 0
    %s50 = scalar_select %p49, %s48, 0
    %s51 = smul.addr %s50, 8
    %s52 = scalar_lea.vmem %s0, %s51
    %s53 = sadd.s32 0, 0
    %p54 = scmp.lt.s32.totalorder %s53, 0
    %s55 = scalar_select %p54, %s53, 0
    %s56 = sadd.s32 0, 0
    %p57 = scmp.lt.s32.totalorder %s56, 0
    %s58 = scalar_select %p57, %s56, 0
    %p59 = scmp.lt.s32.totalorder %s58, 0
    %s60 = scalar_select %p59, %s58, 0
    %s61 = smul.addr %s60, 8
    %s62 = scalar_lea.vmem %s1, %s61
    %s63 = sadd.s32 0, 0
    %p64 = scmp.lt.s32.totalorder %s63, 0
    %s65 = scalar_select %p64, %s63, 0
    %p66 = scmp.eq.s32.totalorder 0, 0
    // Predicated region
    $region10: #{tpu_custom_call.1} parent=1 // pred_check
      %p67 = pneg %p66
    $region11: #{tpu_custom_call.1} parent=1 // pred_check_branch
      %69 = sbr.rel (%p67) target = $region13
    $region12: #{tpu_custom_call.1} parent=1 // pred_region
      %vm70 = vcmask 7168
      %71 = vst.msk [vmem:[#allocation2] sm:$0xff] %vm70, 0.0
    $region13: #{tpu_custom_call.1} parent=1 // pred_fallthru
      _
    %v72 = vld [vmem:[%s52] sm:$0xff]
    %v73 = vld [vmem:[%s62] sm:$0xff]
    %74 = vmax.xlane.f32.xlu0 %v72
    %v75 = vpop.xlane.xlu0 %74
    %v76 = vsub.f32 %v72, %v75
    %v77 = vmul.f32 %v76, 1.442695
    %v78 = vpow.pop %v77
    %79 = vadd.xlane.f32.xlu0 %v78
    %v80 = vpop.xlane.xlu0 %79
    %v81 = vlog2.pop %v80
    %v82 = vmul.f32 %v81, 0.6931472
    %v83 = vlaneseq
    %v84 = vand.u32 %v83, 127
    %85 = vset.pattern.permute.xlu0 0
    %86 = vperm.xlu0 %85, %v73
    %v87 = vpop.permute.xlu0 %86
    %vm88 = vcmp.eq.s32.totalorder %v84, %v87
    %v89 = vsel %vm88, 0.9007813, 0.00078125
    %v90 = vmul.f32 %v89, %v76
    %91 = vadd.xlane.f32.xlu0 %v90
    %v92 = vpop.xlane.xlu0 %91
    %v93 = vsub.f32 %v82, %v92
    %s94 = sadd.s32 0, 0
    %v95 = vlaneseq
    %v96 = vshrl.u32 %v95, 7
    %s97 = smul.u32 %s94, 8
    %v98 = vstv %s97
    %v99 = vadd.s32 %v96, %v98
    %vm100 = vcmp.lt.s32.totalorder %v99, 8
    %v101 = vsel %vm100, %v93, 0.0
    %v102 = vld [vmem:[#allocation2] sm:$0xff]
    %v103 = vadd.f32 %v102, %v101
    %vm104 = vcmask 7168
    %105 = vst.msk [vmem:[#allocation2] sm:$0xff] %vm104, %v103
    // Predicated region
    $region14: #{tpu_custom_call.1} parent=1 // pred_check
      %p106 = pneg %p66
    $region15: #{tpu_custom_call.1} parent=1 // pred_check_branch
      %108 = sbr.rel (%p106) target = $region17
    $region16: #{tpu_custom_call.1} parent=1 // pred_region
      %v109 = vld [vmem:[#allocation2] sm:$0xff]
      %v110 = vsel %vm104, %v109, 0.0
      %111 = vadd.xlane.f32.xlu0 %v110
      %v112 = vpop.xlane.xlu0 %111
      %v113 = vrot.slane %v112, 4
      %v114 = vadd.f32 %v112, %v113
      %v115 = vrot.slane %v114, 2
      %v116 = vadd.f32 %v114, %v115
      %v117 = vrot.slane %v116, 1
      %v118 = vadd.f32 %v116, %v117
      %s119 = vtos %v118
      %s120 = scalar_lea.smem [#allocation3], 0
      %121 = sst [smem:[%s120]] %s119
    $region17: #{tpu_custom_call.1} parent=1 // pred_fallthru
      _
    // Predicated region
    $region18: #{tpu_custom_call.1} parent=1 // pred_check
      _
    $region19: #{tpu_custom_call.1} parent=1 // pred_check_branch
      %123 = sbr.rel (0) target = $region21
    $region20: #{tpu_custom_call.1} parent=1 // pred_region
      %125 = vsyncadd [#allocation4], 0
      %s127 = sshll.u32 %s2, 4
      %s128 = int_to_ptr.hbm [resolvable:$true] %s127
      %130 = dma.smem_to_hbm [#allocation3], 16, %s128, [#allocation4]
    $region21: #{tpu_custom_call.1} parent=1 // pred_fallthru
      _
    // Predicated region
    $region22: #{tpu_custom_call.1} parent=1 // pred_check
      _
    $region23: #{tpu_custom_call.1} parent=1 // pred_check_branch
      %132 = sbr.rel (0) target = $region25
    $region24: #{tpu_custom_call.1} parent=1 // pred_region
      %134 = dma.done [#allocation4], 16
    $region25: #{tpu_custom_call.1} parent=1 // pred_fallthru
      _
    %135 = sfence
    %136 = vsyncpa [#allocation4], 1

</llo_original>
